<compile_context>
chip_gen: v7x
topology: tpu7x:2x2x1
jax: 0.10.0
libtpu: 0.0.40
codegen_flags: <defaults>
</compile_context>

<pallas_src>
import functools

import jax
import jax.numpy as jnp
from jax.experimental import pallas as pl
from jax.experimental.pallas import tpu as pltpu


def _silu(x):
    return x * jax.lax.logistic(x)


def _round_up(x, m):
    return (x + m - 1) // m * m


def _gated_equivariant_kernel(
    s_ref, v_ref,
    wvw_ref,                 # (n_vin, 2*n_vout)   fused [wV | wW]
    w1s_ref, w1v_ref, b1_ref,
    w2_ref, b2_ref,          # fused [w2s | w2v], [b2s | b2v]
    sout_ref, vout_ref,
    *, n_vin: int, n_vout: int, n_sout: int, apply_sactivation: bool,
):
    f32 = jnp.float32
    wvw = wvw_ref[...]                                 # (n_vin, 2*n_vout)

    # mix_vectors: one fused (V|W) matmul per cartesian component.
    # Components are read straight off the ref with static slices (no full-tile
    # load + value relayout).
    V = []
    W = []
    for c in range(3):
        vc = v_ref[:, c * n_vin:(c + 1) * n_vin]       # (T, n_vin)
        vw = jnp.dot(vc, wvw, preferred_element_type=f32)   # (T, 2*n_vout) f32
        V.append(vw[:, :n_vout])
        W.append(vw[:, n_vout:])

    # ||V||_2 over the cartesian axis (dim=-2 in the PyTorch module).
    vnorm = jnp.sqrt(V[0] * V[0] + V[1] * V[1] + V[2] * V[2])   # (T, n_vout)

    # scalar_net layer 1 on ctx = concat([scalars, |V|], -1), written as a
    # split matmul (no lane-axis concat of ctx needed).
    h = (jnp.dot(s_ref[...], w1s_ref[...], preferred_element_type=f32)
         + jnp.dot(vnorm.astype(w1v_ref.dtype), w1v_ref[...],
                   preferred_element_type=f32)
         + b1_ref[...].astype(f32))
    h = _silu(h)                                       # internal activation

    # scalar_net layer 2 (fused): output = [s_out | gate]
    out2 = (jnp.dot(h.astype(w2_ref.dtype), w2_ref[...],
                    preferred_element_type=f32)
            + b2_ref[...].astype(f32))
    s_out = out2[:, :n_sout]
    gate = out2[:, n_sout:]                            # (T, n_vout)

    if apply_sactivation:
        s_out = _silu(s_out)

    sout_ref[...] = s_out.astype(sout_ref.dtype)
    # Gated vector output in component-folded layout (T, 3*n_vout), stored as
    # one dense full-block write.
    vout_ref[...] = jnp.concatenate(
        [gate * W[0], gate * W[1], gate * W[2]], axis=1
    ).astype(vout_ref.dtype)


def gated_equivariant_block(scalars, vectors, params, *, tile_n=512,
                            sactivation=False):
    """Pallas forward of GatedEquivariantBlock.

    scalars: [N, n_sin], vectors: [N, 3, n_vin]  (PyTorch layout).
    Returns (s_out [N, n_sout], v_out [N, 3, n_vout]).
    """
    wV, wW, w1s, w1v, b1, w2s, b2s, w2v, b2v = params
    N, n_sin = scalars.shape
    _, three, n_vin = vectors.shape
    assert three == 3
    n_vout = wV.shape[1]
    n_hidden = w1s.shape[1]
    n_sout = w2s.shape[1]

    # --- fuse small weights once (tiny, outside the kernel) -----------------
    wVW = jnp.concatenate([wV, wW], axis=1)            # (n_vin, 2*n_vout)
    w2 = jnp.concatenate([w2s, w2v], axis=1)           # (n_hidden, n_sout+n_vout)
    b2 = jnp.concatenate([b2s, b2v], axis=1)           # (1, n_sout+n_vout)

    # --- fold cartesian axis into features: free reshape, no HBM transpose --
    v_flat = vectors.reshape(N, 3 * n_vin)

    # --- row tiling: large tiles, N zero-padded to a tile multiple ----------
    tn = max(8, min(_round_up(tile_n, 8), _round_up(N, 8)))
    N_pad = _round_up(N, tn)
    if N_pad != N:
        scalars_p = jnp.pad(scalars, ((0, N_pad - N), (0, 0)))
        v_flat = jnp.pad(v_flat, ((0, N_pad - N), (0, 0)))
    else:
        scalars_p = scalars
    grid = (N_pad // tn,)

    def full(arr):
        return pl.BlockSpec(arr.shape, lambda i: (0,) * arr.ndim)

    kernel = functools.partial(
        _gated_equivariant_kernel,
        n_vin=n_vin, n_vout=n_vout, n_sout=n_sout,
        apply_sactivation=sactivation,
    )

    itemsize = scalars.dtype.itemsize
    flops = 2 * N_pad * (3 * n_vin * 2 * n_vout
                         + n_sin * n_hidden + n_vout * n_hidden
                         + n_hidden * (n_sout + n_vout))
    transcendentals = N_pad * (n_hidden + (n_sout if sactivation else 0))
    bytes_accessed = int(
        scalars_p.size * itemsize + v_flat.size * v_flat.dtype.itemsize
        + sum(int(w.size) * w.dtype.itemsize
              for w in (wVW, w1s, w1v, b1, w2, b2))
        + N_pad * n_sout * itemsize
        + N_pad * 3 * n_vout * vectors.dtype.itemsize)

    s_out, v_out_flat = pl.pallas_call(
        kernel,
        out_shape=(
            jax.ShapeDtypeStruct((N_pad, n_sout), scalars.dtype),
            jax.ShapeDtypeStruct((N_pad, 3 * n_vout), vectors.dtype),
        ),
        grid=grid,
        in_specs=[
            pl.BlockSpec((tn, n_sin), lambda i: (i, 0)),        # scalars tile
            pl.BlockSpec((tn, 3 * n_vin), lambda i: (i, 0)),    # folded vectors
            full(wVW), full(w1s), full(w1v), full(b1), full(w2), full(b2),
        ],
        out_specs=(
            pl.BlockSpec((tn, n_sout), lambda i: (i, 0)),
            pl.BlockSpec((tn, 3 * n_vout), lambda i: (i, 0)),
        ),
        compiler_params=pltpu.CompilerParams(
            dimension_semantics=("parallel",),
            vmem_limit_bytes=32 * 1024 * 1024,
        ),
        cost_estimate=pl.CostEstimate(
            flops=flops,
            transcendentals=transcendentals,
            bytes_accessed=bytes_accessed,
        ),
    )(scalars_p, v_flat, wVW, w1s, w1v, b1, w2, b2)

    s_out = s_out[:N]
    v_out = v_out_flat[:N].reshape(N, 3, n_vout)        # free reshape
    return s_out, v_out


def reference(scalars, vectors, params, *, sactivation=False):
    """Pure-JAX reference mirroring the PyTorch forward exactly."""
    wV, wW, w1s, w1v, b1, w2s, b2s, w2v, b2v = params
    n_vout = wV.shape[1]
    wmix = jnp.concatenate([wV, wW], axis=1)            # mix_vectors weight
    vmix = vectors @ wmix                               # (N, 3, 2*n_vout)
    vectors_V = vmix[..., :n_vout]
    vectors_W = vmix[..., n_vout:]
    vectors_Vn = jnp.linalg.norm(vectors_V, axis=-2)    # (N, n_vout)
    ctx = jnp.concatenate([scalars, vectors_Vn], axis=-1)
    w1 = jnp.concatenate([w1s, w1v], axis=0)
    h = jax.nn.silu(ctx @ w1 + b1)
    s_out = h @ w2s + b2s
    gate = h @ w2v + b2v
    if sactivation:
        s_out = jax.nn.silu(s_out)
    v_out = gate[:, None, :] * vectors_W
    return s_out, v_out


def init_params(key, n_sin, n_vin, n_sout, n_vout, n_hidden, dtype=jnp.float32):
    ks = jax.random.split(key, 9)
    scale = 0.1
    wV = scale * jax.random.normal(ks[0], (n_vin, n_vout), dtype)
    wW = scale * jax.random.normal(ks[1], (n_vin, n_vout), dtype)
    w1s = scale * jax.random.normal(ks[2], (n_sin, n_hidden), dtype)
    w1v = scale * jax.random.normal(ks[3], (n_vout, n_hidden), dtype)
    b1 = scale * jax.random.normal(ks[4], (1, n_hidden), dtype)
    w2s = scale * jax.random.normal(ks[5], (n_hidden, n_sout), dtype)
    b2s = scale * jax.random.normal(ks[6], (1, n_sout), dtype)
    w2v = scale * jax.random.normal(ks[7], (n_hidden, n_vout), dtype)
    b2v = scale * jax.random.normal(ks[8], (1, n_vout), dtype)
    return (wV, wW, w1s, w1v, b1, w2s, b2s, w2v, b2v)


if __name__ == "__main__":
    # Small shapes consistent with the module (N atoms, scalar/vector dims).
    # N=19 deliberately exercises the row-padding path (pads to a multiple of 8).
    N, n_sin, n_vin, n_sout, n_vout, n_hidden = 19, 32, 32, 32, 32, 64

    key = jax.random.PRNGKey(0)
    k_s, k_v, k_p = jax.random.split(key, 3)
    scalars = jax.random.normal(k_s, (N, n_sin), jnp.float32)
    vectors = jax.random.normal(k_v, (N, 3, n_vin), jnp.float32)
    params = init_params(k_p, n_sin, n_vin, n_sout, n_vout, n_hidden)

    for sact in (False, True):
        s_out, v_out = gated_equivariant_block(scalars, vectors, params,
                                               tile_n=512, sactivation=sact)
        jax.block_until_ready((s_out, v_out))

        s_ref, v_ref = reference(scalars, vectors, params, sactivation=sact)
        assert s_out.shape == (N, n_sout) and v_out.shape == (N, 3, n_vout)
        assert jnp.allclose(s_out, s_ref, atol=1e-4, rtol=1e-4)
        assert jnp.allclose(v_out, v_ref, atol=1e-4, rtol=1e-4)

    print("KERNEL_OK")
</pallas_src>

<mosaic_0001>
module attributes {stable_mosaic.version = 11 : i64} {
  func.func @_gated_equivariant_kernel(%arg0: i32, %arg1: memref<24x32xf32, #tpu.memory_space<vmem>>, %arg2: memref<24x96xf32, #tpu.memory_space<vmem>>, %arg3: memref<32x64xf32, #tpu.memory_space<vmem>>, %arg4: memref<32x64xf32, #tpu.memory_space<vmem>>, %arg5: memref<32x64xf32, #tpu.memory_space<vmem>>, %arg6: memref<1x64xf32, #tpu.memory_space<vmem>>, %arg7: memref<64x64xf32, #tpu.memory_space<vmem>>, %arg8: memref<1x64xf32, #tpu.memory_space<vmem>>, %arg9: memref<24x32xf32, #tpu.memory_space<vmem>>, %arg10: memref<24x96xf32, #tpu.memory_space<vmem>>) attributes {dimension_semantics = [#tpu.dimension_semantics<parallel>], iteration_bounds = array<i64: 1>, scalar_prefetch = 0 : i64, scratch_operands = 0 : i64, tpu.core_type = #tpu.core_type<tc>, window_params = [{transform_indices = @transform_0, window_bounds = array<i64: 24, 32>}, {transform_indices = @transform_1, window_bounds = array<i64: 24, 96>}, {pipeline_mode = #tpu.pipeline_mode<synchronous>, transform_indices = @transform_2, window_bounds = array<i64: 32, 64>}, {pipeline_mode = #tpu.pipeline_mode<synchronous>, transform_indices = @transform_3, window_bounds = array<i64: 32, 64>}, {pipeline_mode = #tpu.pipeline_mode<synchronous>, transform_indices = @transform_4, window_bounds = array<i64: 32, 64>}, {pipeline_mode = #tpu.pipeline_mode<synchronous>, transform_indices = @transform_5, window_bounds = array<i64: 1, 64>}, {pipeline_mode = #tpu.pipeline_mode<synchronous>, transform_indices = @transform_6, window_bounds = array<i64: 64, 64>}, {pipeline_mode = #tpu.pipeline_mode<synchronous>, transform_indices = @transform_7, window_bounds = array<i64: 1, 64>}, {transform_indices = @transform_8, window_bounds = array<i64: 24, 32>}, {transform_indices = @transform_9, window_bounds = array<i64: 24, 96>}]} {
    %c0 = arith.constant 0 : index
    %c0_0 = arith.constant 0 : index
    %0 = vector.load %arg3[%c0, %c0_0] : memref<32x64xf32, #tpu.memory_space<vmem>>, vector<32x64xf32>
    %c0_1 = arith.constant 0 : index
    %c0_2 = arith.constant 0 : index
    %1 = vector.load %arg2[%c0_1, %c0_2] : memref<24x96xf32, #tpu.memory_space<vmem>>, vector<24x32xf32>
    %cst = arith.constant dense<0.000000e+00> : vector<24x64xf32>
    %2 = tpu.matmul %1, %0, %cst {dimension_numbers = #tpu.dot_dimension_numbers<[1], [0], [0], [1], [0, 0, 1, 1], [], []>} : vector<24x32xf32>, vector<32x64xf32>, vector<24x64xf32> -> vector<24x64xf32>
    %3 = vector.extract_strided_slice %2 {offsets = [0, 0], sizes = [24, 32], strides = [1, 1]} : vector<24x64xf32> to vector<24x32xf32>
    %4 = vector.extract_strided_slice %2 {offsets = [0, 32], sizes = [24, 32], strides = [1, 1]} : vector<24x64xf32> to vector<24x32xf32>
    %c0_3 = arith.constant 0 : index
    %c32 = arith.constant 32 : index
    %5 = vector.load %arg2[%c0_3, %c32] : memref<24x96xf32, #tpu.memory_space<vmem>>, vector<24x32xf32>
    %cst_4 = arith.constant dense<0.000000e+00> : vector<24x64xf32>
    %6 = tpu.matmul %5, %0, %cst_4 {dimension_numbers = #tpu.dot_dimension_numbers<[1], [0], [0], [1], [0, 0, 1, 1], [], []>} : vector<24x32xf32>, vector<32x64xf32>, vector<24x64xf32> -> vector<24x64xf32>
    %7 = vector.extract_strided_slice %6 {offsets = [0, 0], sizes = [24, 32], strides = [1, 1]} : vector<24x64xf32> to vector<24x32xf32>
    %8 = vector.extract_strided_slice %6 {offsets = [0, 32], sizes = [24, 32], strides = [1, 1]} : vector<24x64xf32> to vector<24x32xf32>
    %c0_5 = arith.constant 0 : index
    %c64 = arith.constant 64 : index
    %9 = vector.load %arg2[%c0_5, %c64] : memref<24x96xf32, #tpu.memory_space<vmem>>, vector<24x32xf32>
    %cst_6 = arith.constant dense<0.000000e+00> : vector<24x64xf32>
    %10 = tpu.matmul %9, %0, %cst_6 {dimension_numbers = #tpu.dot_dimension_numbers<[1], [0], [0], [1], [0, 0, 1, 1], [], []>} : vector<24x32xf32>, vector<32x64xf32>, vector<24x64xf32> -> vector<24x64xf32>
    %11 = vector.extract_strided_slice %10 {offsets = [0, 0], sizes = [24, 32], strides = [1, 1]} : vector<24x64xf32> to vector<24x32xf32>
    %12 = vector.extract_strided_slice %10 {offsets = [0, 32], sizes = [24, 32], strides = [1, 1]} : vector<24x64xf32> to vector<24x32xf32>
    %13 = arith.mulf %3, %3 : vector<24x32xf32>
    %14 = arith.mulf %7, %7 : vector<24x32xf32>
    %15 = arith.addf %13, %14 : vector<24x32xf32>
    %16 = arith.mulf %11, %11 : vector<24x32xf32>
    %17 = arith.addf %15, %16 : vector<24x32xf32>
    %18 = math.sqrt %17 : vector<24x32xf32>
    %c0_7 = arith.constant 0 : index
    %c0_8 = arith.constant 0 : index
    %19 = vector.load %arg1[%c0_7, %c0_8] : memref<24x32xf32, #tpu.memory_space<vmem>>, vector<24x32xf32>
    %c0_9 = arith.constant 0 : index
    %c0_10 = arith.constant 0 : index
    %20 = vector.load %arg4[%c0_9, %c0_10] : memref<32x64xf32, #tpu.memory_space<vmem>>, vector<32x64xf32>
    %cst_11 = arith.constant dense<0.000000e+00> : vector<24x64xf32>
    %21 = tpu.matmul %19, %20, %cst_11 {dimension_numbers = #tpu.dot_dimension_numbers<[1], [0], [0], [1], [0, 0, 1, 1], [], []>} : vector<24x32xf32>, vector<32x64xf32>, vector<24x64xf32> -> vector<24x64xf32>
    %c0_12 = arith.constant 0 : index
    %c0_13 = arith.constant 0 : index
    %22 = vector.load %arg5[%c0_12, %c0_13] : memref<32x64xf32, #tpu.memory_space<vmem>>, vector<32x64xf32>
    %cst_14 = arith.constant dense<0.000000e+00> : vector<24x64xf32>
    %23 = tpu.matmul %18, %22, %cst_14 {dimension_numbers = #tpu.dot_dimension_numbers<[1], [0], [0], [1], [0, 0, 1, 1], [], []>} : vector<24x32xf32>, vector<32x64xf32>, vector<24x64xf32> -> vector<24x64xf32>
    %24 = arith.addf %21, %23 : vector<24x64xf32>
    %c0_15 = arith.constant 0 : index
    %c0_16 = arith.constant 0 : index
    %25 = vector.load %arg6[%c0_15, %c0_16] : memref<1x64xf32, #tpu.memory_space<vmem>>, vector<1x64xf32>
    %26 = vector.broadcast %25 : vector<1x64xf32> to vector<24x64xf32>
    %27 = arith.addf %24, %26 : vector<24x64xf32>
    %28 = arith.negf %27 : vector<24x64xf32>
    %29 = math.exp %28 : vector<24x64xf32>
    %cst_17 = arith.constant 1.000000e+00 : f32
    %30 = vector.broadcast %cst_17 : f32 to vector<24x64xf32>
    %31 = arith.addf %30, %29 : vector<24x64xf32>
    %32 = arith.divf %30, %31 : vector<24x64xf32>
    %33 = arith.mulf %27, %32 : vector<24x64xf32>
    %c0_18 = arith.constant 0 : index
    %c0_19 = arith.constant 0 : index
    %34 = vector.load %arg7[%c0_18, %c0_19] : memref<64x64xf32, #tpu.memory_space<vmem>>, vector<64x64xf32>
    %cst_20 = arith.constant dense<0.000000e+00> : vector<24x64xf32>
    %35 = tpu.matmul %33, %34, %cst_20 {dimension_numbers = #tpu.dot_dimension_numbers<[1], [0], [0], [1], [0, 0, 1, 1], [], []>} : vector<24x64xf32>, vector<64x64xf32>, vector<24x64xf32> -> vector<24x64xf32>
    %c0_21 = arith.constant 0 : index
    %c0_22 = arith.constant 0 : index
    %36 = vector.load %arg8[%c0_21, %c0_22] : memref<1x64xf32, #tpu.memory_space<vmem>>, vector<1x64xf32>
    %37 = vector.broadcast %36 : vector<1x64xf32> to vector<24x64xf32>
    %38 = arith.addf %35, %37 : vector<24x64xf32>
    %39 = vector.extract_strided_slice %38 {offsets = [0, 0], sizes = [24, 32], strides = [1, 1]} : vector<24x64xf32> to vector<24x32xf32>
    %40 = vector.extract_strided_slice %38 {offsets = [0, 32], sizes = [24, 32], strides = [1, 1]} : vector<24x64xf32> to vector<24x32xf32>
    %c0_23 = arith.constant 0 : index
    %c0_24 = arith.constant 0 : index
    %41 = vector.load %arg9[%c0_23, %c0_24] : memref<24x32xf32, #tpu.memory_space<vmem>>, vector<24x32xf32>
    tpu.vector_store %arg9[%c0_23, %c0_24], %39 {strides = array<i32>} : memref<24x32xf32, #tpu.memory_space<vmem>>, vector<24x32xf32>,
    %42 = arith.mulf %40, %4 : vector<24x32xf32>
    %43 = arith.mulf %40, %8 : vector<24x32xf32>
    %44 = arith.mulf %40, %12 : vector<24x32xf32>
    %45 = tpu.concatenate %42, %43, %44 in 1 : vector<24x32xf32>, vector<24x32xf32>, vector<24x32xf32> -> vector<24x96xf32>
    %c0_25 = arith.constant 0 : index
    %c0_26 = arith.constant 0 : index
    %46 = vector.load %arg10[%c0_25, %c0_26] : memref<24x96xf32, #tpu.memory_space<vmem>>, vector<24x96xf32>
    tpu.vector_store %arg10[%c0_25, %c0_26], %45 {strides = array<i32>} : memref<24x96xf32, #tpu.memory_space<vmem>>, vector<24x96xf32>,
    return
  }
  func.func @transform_0(%arg0: i32) -> (i32, i32) {
    %c0_i32 = arith.constant 0 : i32
    %c0_i32_0 = arith.constant 0 : i32
    return %arg0, %c0_i32 : i32, i32
  }
  func.func @transform_1(%arg0: i32) -> (i32, i32) {
    %c0_i32 = arith.constant 0 : i32
    %c0_i32_0 = arith.constant 0 : i32
    return %arg0, %c0_i32 : i32, i32
  }
  func.func @transform_2(%arg0: i32) -> (i32, i32) {
    %c0_i32 = arith.constant 0 : i32
    %c0_i32_0 = arith.constant 0 : i32
    %c0_i32_1 = arith.constant 0 : i32
    return %c0_i32, %c0_i32_0 : i32, i32
  }
  func.func @transform_3(%arg0: i32) -> (i32, i32) {
    %c0_i32 = arith.constant 0 : i32
    %c0_i32_0 = arith.constant 0 : i32
    %c0_i32_1 = arith.constant 0 : i32
    return %c0_i32, %c0_i32_0 : i32, i32
  }
  func.func @transform_4(%arg0: i32) -> (i32, i32) {
    %c0_i32 = arith.constant 0 : i32
    %c0_i32_0 = arith.constant 0 : i32
    %c0_i32_1 = arith.constant 0 : i32
    return %c0_i32, %c0_i32_0 : i32, i32
  }
  func.func @transform_5(%arg0: i32) -> (i32, i32) {
    %c0_i32 = arith.constant 0 : i32
    %c0_i32_0 = arith.constant 0 : i32
    %c0_i32_1 = arith.constant 0 : i32
    return %c0_i32, %c0_i32_0 : i32, i32
  }
  func.func @transform_6(%arg0: i32) -> (i32, i32) {
    %c0_i32 = arith.constant 0 : i32
    %c0_i32_0 = arith.constant 0 : i32
    %c0_i32_1 = arith.constant 0 : i32
    return %c0_i32, %c0_i32_0 : i32, i32
  }
  func.func @transform_7(%arg0: i32) -> (i32, i32) {
    %c0_i32 = arith.constant 0 : i32
    %c0_i32_0 = arith.constant 0 : i32
    %c0_i32_1 = arith.constant 0 : i32
    return %c0_i32, %c0_i32_0 : i32, i32
  }
  func.func @transform_8(%arg0: i32) -> (i32, i32) {
    %c0_i32 = arith.constant 0 : i32
    %c0_i32_0 = arith.constant 0 : i32
    return %arg0, %c0_i32 : i32, i32
  }
  func.func @transform_9(%arg0: i32) -> (i32, i32) {
    %c0_i32 = arith.constant 0 : i32
    %c0_i32_0 = arith.constant 0 : i32
    return %arg0, %c0_i32 : i32, i32
  }
}

</mosaic_0001>

<llo_original>
// kernel: tpu_custom_call.1
$region0: #{tpu_custom_call.1}
  #allocation0 [shape = 'u32[]', space=smem, size = 0x4, offset = 0x4, fixed_abs, tag = 'smem constant byte address 0x4 - core index']
  #allocation1 [shape = 'u32[144,128]{1,0:T(1,128)}', space=vmem, size = 0x12000, scoped, tag = 'internal scratch']
  %s0 = inlined_call_operand.hbm [shape: f32[24,32], index: 0, kind: input, shape index: {}]
  %s1 = inlined_call_operand.hbm [shape: f32[24,96], index: 1, kind: input, shape index: {}]
  %s2 = inlined_call_operand.hbm [shape: f32[32,64], index: 2, kind: input, shape index: {}]
  %s3 = inlined_call_operand.hbm [shape: f32[32,64], index: 3, kind: input, shape index: {}]
  %s4 = inlined_call_operand.hbm [shape: f32[32,64], index: 4, kind: input, shape index: {}]
  %s5 = inlined_call_operand.vmem [shape: f32[1,64], index: 5, kind: input, shape index: {}]
  %s6 = inlined_call_operand.hbm [shape: f32[64,64], index: 6, kind: input, shape index: {}]
  %s7 = inlined_call_operand.vmem [shape: f32[1,64], index: 7, kind: input, shape index: {}]
  %s8 = inlined_call_operand.hbm [shape: f32[24,32], index: 8, kind: output, shape index: {0}]
  %s9 = inlined_call_operand.hbm [shape: f32[24,96], index: 9, kind: output, shape index: {1}]
  %10 = xla_tuple %s8, %s9
  %s11 = sld [smem:[#allocation0]]
  $region74: #{tpu_custom_call.1} parent=0
    _
  %s13 = ssub.s32 1, %s11
  %s14 = scalar_select 0, %s13, %s11
  $region1: #{tpu_custom_call.1} parent=0
    #allocation2 [shape = 'u8[12288]{0}', space=vmem, size = 0x3000, scoped, tag = 'input window, operand 0, single buffered']
    #allocation3 [shape = 's32[1]{0}', space=sflag, size = 0x4, scoped, tag = 'scoped memory for tpu_custom_call.1']
    #allocation4 [shape = 's32[1]{0}', space=sflag, size = 0x4, scoped, tag = 'scoped memory for tpu_custom_call.1']
    #allocation5 [shape = 'u8[12288]{0}', space=vmem, size = 0x3000, scoped, tag = 'input window, operand 1, single buffered']
    #allocation6 [shape = 's32[1]{0}', space=sflag, size = 0x4, scoped, tag = 'scoped memory for tpu_custom_call.1']
    #allocation7 [shape = 'u8[16384]{0}', space=vmem, size = 0x4000, scoped, tag = 'input window, operand 2, single buffered']
    #allocation8 [shape = 'u8[16384]{0}', space=vmem, size = 0x4000, scoped, tag = 'input window, operand 3, single buffered']
    #allocation9 [shape = 's32[1]{0}', space=sflag, size = 0x4, scoped, tag = 'scoped memory for tpu_custom_call.1']
    #allocation10 [shape = 'u8[16384]{0}', space=vmem, size = 0x4000, scoped, tag = 'input window, operand 4, single buffered']
    #allocation11 [shape = 'u8[32768]{0}', space=vmem, size = 0x8000, scoped, tag = 'input window, operand 6, single buffered']
    #allocation12 [shape = 's32[1]{0}', space=sflag, size = 0x4, scoped, tag = 'scoped memory for tpu_custom_call.1']
    #allocation13 [shape = 'u8[12288]{0}', space=vmem, size = 0x3000, scoped, tag = 'output window, operand 0, single buffered']
    #allocation14 [shape = 'u8[12288]{0}', space=vmem, size = 0x3000, scoped, tag = 'output window, operand 1, single buffered']
    #allocation15 [shape = 's32[1]{0}', space=sflag, size = 0x4, scoped, tag = 'scoped memory for tpu_custom_call.1']
    %15 = vsyncpa [#allocation3], 0
    %16 = vsyncpa [#allocation6], 0
    %17 = vsyncpa [#allocation9], 0
    %18 = vsyncpa [#allocation12], 0
    %19 = vsyncpa [#allocation4], 0
    %20 = vsyncpa [#allocation15], 0
    // Predicated region
    $region2: #{tpu_custom_call.1} parent=1 // pred_check
      _
    $region3: #{tpu_custom_call.1} parent=1 // pred_check_branch
      %22 = sbr.rel (0) target = $region5
    $region4: #{tpu_custom_call.1} parent=1 // pred_region
      %s24 = ssub.s32 384, 384
      %25 = vsyncadd [#allocation3], %s24
      %s26 = sshll.u32 [#allocation2], 4
      %s27 = int_to_ptr.vmem [resolvable:$true] %s26
      %32 = dma.hbm_to_vmem [thread:$0]  %s0, 384, %s27, [#allocation3], 128, 128, 8
    $region5: #{tpu_custom_call.1} parent=1 // pred_fallthru
      _
    // Predicated region
    $region6: #{tpu_custom_call.1} parent=1 // pred_check
      _
    $region7: #{tpu_custom_call.1} parent=1 // pred_check_branch
      %34 = sbr.rel (0) target = $region9
    $region8: #{tpu_custom_call.1} parent=1 // pred_region
      %s36 = ssub.s32 384, 384
      %37 = vsyncadd [#allocation6], %s36
      %s38 = sshll.u32 [#allocation5], 4
      %s39 = int_to_ptr.vmem [resolvable:$true] %s38
      %44 = dma.hbm_to_vmem [thread:$0]  %s1, 384, %s39, [#allocation6], 128, 128, 8
    $region9: #{tpu_custom_call.1} parent=1 // pred_fallthru
      _
    // Predicated region
    $region10: #{tpu_custom_call.1} parent=1 // pred_check
      _
    $region11: #{tpu_custom_call.1} parent=1 // pred_check_branch
      %46 = sbr.rel (0) target = $region13
    $region12: #{tpu_custom_call.1} parent=1 // pred_region
      %s48 = ssub.s32 512, 512
      %49 = vsyncadd [#allocation6], %s48
      %s50 = sshll.u32 [#allocation7], 4
      %s51 = int_to_ptr.vmem [resolvable:$true] %s50
      %56 = dma.hbm_to_vmem [thread:$0]  %s2, 512, %s51, [#allocation6], 128, 128, 8
    $region13: #{tpu_custom_call.1} parent=1 // pred_fallthru
      _
    // Predicated region
    $region14: #{tpu_custom_call.1} parent=1 // pred_check
      _
    $region15: #{tpu_custom_call.1} parent=1 // pred_check_branch
      %58 = sbr.rel (0) target = $region17
    $region16: #{tpu_custom_call.1} parent=1 // pred_region
      %s60 = ssub.s32 512, 512
      %61 = vsyncadd [#allocation9], %s60
      %s62 = sshll.u32 [#allocation8], 4
      %s63 = int_to_ptr.vmem [resolvable:$true] %s62
      %68 = dma.hbm_to_vmem [thread:$0]  %s3, 512, %s63, [#allocation9], 128, 128, 8
    $region17: #{tpu_custom_call.1} parent=1 // pred_fallthru
      _
    // Predicated region
    $region18: #{tpu_custom_call.1} parent=1 // pred_check
      _
    $region19: #{tpu_custom_call.1} parent=1 // pred_check_branch
      %70 = sbr.rel (0) target = $region21
    $region20: #{tpu_custom_call.1} parent=1 // pred_region
      %s72 = ssub.s32 512, 512
      %73 = vsyncadd [#allocation9], %s72
      %s74 = sshll.u32 [#allocation10], 4
      %s75 = int_to_ptr.vmem [resolvable:$true] %s74
      %80 = dma.hbm_to_vmem [thread:$0]  %s4, 512, %s75, [#allocation9], 128, 128, 8
    $region21: #{tpu_custom_call.1} parent=1 // pred_fallthru
      _
    // Predicated region
    $region22: #{tpu_custom_call.1} parent=1 // pred_check
      _
    $region23: #{tpu_custom_call.1} parent=1 // pred_check_branch
      %82 = sbr.rel (0) target = $region25
    $region24: #{tpu_custom_call.1} parent=1 // pred_region
      _
    $region25: #{tpu_custom_call.1} parent=1 // pred_fallthru
      _
    // Predicated region
    $region26: #{tpu_custom_call.1} parent=1 // pred_check
      _
    $region27: #{tpu_custom_call.1} parent=1 // pred_check_branch
      %84 = sbr.rel (0) target = $region29
    $region28: #{tpu_custom_call.1} parent=1 // pred_region
      %s86 = ssub.s32 1024, 1024
      %87 = vsyncadd [#allocation12], %s86
      %s88 = sshll.u32 [#allocation11], 4
      %s89 = int_to_ptr.vmem [resolvable:$true] %s88
      %94 = dma.hbm_to_vmem [thread:$0]  %s6, 1024, %s89, [#allocation12], 128, 128, 8
    $region29: #{tpu_custom_call.1} parent=1 // pred_fallthru
      _
    // Predicated region
    $region30: #{tpu_custom_call.1} parent=1 // pred_check
      _
    $region31: #{tpu_custom_call.1} parent=1 // pred_check_branch
      %96 = sbr.rel (0) target = $region33
    $region32: #{tpu_custom_call.1} parent=1 // pred_region
      _
    $region33: #{tpu_custom_call.1} parent=1 // pred_fallthru
      _
    // Predicated region
    $region34: #{tpu_custom_call.1} parent=1 // pred_check
      _
    $region35: #{tpu_custom_call.1} parent=1 // pred_check_branch
      %98 = sbr.rel (0) target = $region37
    $region36: #{tpu_custom_call.1} parent=1 // pred_region
      %99 = dma.done [#allocation3], 384
    $region37: #{tpu_custom_call.1} parent=1 // pred_fallthru
      _
    // Predicated region
    $region38: #{tpu_custom_call.1} parent=1 // pred_check
      _
    $region39: #{tpu_custom_call.1} parent=1 // pred_check_branch
      %101 = sbr.rel (0) target = $region41
    $region40: #{tpu_custom_call.1} parent=1 // pred_region
      %102 = dma.done [#allocation6], 384
    $region41: #{tpu_custom_call.1} parent=1 // pred_fallthru
      _
    // Predicated region
    $region42: #{tpu_custom_call.1} parent=1 // pred_check
      _
    $region43: #{tpu_custom_call.1} parent=1 // pred_check_branch
      %104 = sbr.rel (0) target = $region45
    $region44: #{tpu_custom_call.1} parent=1 // pred_region
      %105 = dma.done [#allocation6], 512
    $region45: #{tpu_custom_call.1} parent=1 // pred_fallthru
      _
    // Predicated region
    $region46: #{tpu_custom_call.1} parent=1 // pred_check
      _
    $region47: #{tpu_custom_call.1} parent=1 // pred_check_branch
      %107 = sbr.rel (0) target = $region49
    $region48: #{tpu_custom_call.1} parent=1 // pred_region
      %108 = dma.done [#allocation9], 512
    $region49: #{tpu_custom_call.1} parent=1 // pred_fallthru
      _
    // Predicated region
    $region50: #{tpu_custom_call.1} parent=1 // pred_check
      _
    $region51: #{tpu_custom_call.1} parent=1 // pred_check_branch
      %110 = sbr.rel (0) target = $region53
    $region52: #{tpu_custom_call.1} parent=1 // pred_region
      %111 = dma.done [#allocation9], 512
    $region53: #{tpu_custom_call.1} parent=1 // pred_fallthru
      _
    // Predicated region
    $region54: #{tpu_custom_call.1} parent=1 // pred_check
      _
    $region55: #{tpu_custom_call.1} parent=1 // pred_check_branch
      %113 = sbr.rel (0) target = $region57
    $region56: #{tpu_custom_call.1} parent=1 // pred_region
      %114 = dma.done [#allocation12], 1024
    $region57: #{tpu_custom_call.1} parent=1 // pred_fallthru
      _
    %v115 = vld [vmem:[#allocation7] sm:$0xff]
    %v116 = vld [vmem:[#allocation7 + $0x8] sm:$0xff]
    %v117 = vld [vmem:[#allocation7 + $0x10] sm:$0xff]
    %v118 = vld [vmem:[#allocation7 + $0x18] sm:$0xff]
    %v119 = vld [vmem:[#allocation5] sm:$0xff]
    %v120 = vld [vmem:[#allocation5 + $0x8] sm:$0xff]
    %v121 = vld [vmem:[#allocation5 + $0x10] sm:$0xff]
    %vm122 = vcmask 261120
    %v124 = vsel %vm122, %v119, 0
    %v127 = vsel %vm122, %v120, 0
    %v130 = vsel %vm122, %v121, 0
    %132 = vmatprep.subr.mxu0 0.0
    %133 = vmatpush1.msra.mxu0 %v115
    %134 = vmatprep.subr.mxu0 0.0
    %135 = vmatpush1.msra.mxu0 %v116
    %136 = vmatprep.subr.mxu0 0.0
    %137 = vmatpush1.msra.mxu0 %v117
    %138 = vmatprep.subr.mxu0 0.0
    %139 = vmatpush1.msra.mxu0 %v118
    %140 = vmatprep.subr.mxu0 0.0
    %141 = vmatpush1.msra.mxu0 0.0
    %142 = vmatprep.subr.mxu0 0.0
    %143 = vmatpush1.msra.mxu0 0.0
    %144 = vmatprep.subr.mxu0 0.0
    %145 = vmatpush1.msra.mxu0 0.0
    %146 = vmatprep.subr.mxu0 0.0
    %147 = vmatpush1.msra.mxu0 0.0
    %148 = vmatprep.subr.mxu0 0.0
    %149 = vmatpush1.msra.mxu0 0.0
    %150 = vmatprep.subr.mxu0 0.0
    %151 = vmatpush1.msra.mxu0 0.0
    %152 = vmatprep.subr.mxu0 0.0
    %153 = vmatpush1.msra.mxu0 0.0
    %154 = vmatprep.subr.mxu0 0.0
    %155 = vmatpush1.msra.mxu0 0.0
    %156 = vmatprep.subr.mxu0 0.0
    %157 = vmatpush1.msra.mxu0 0.0
    %158 = vmatprep.subr.mxu0 0.0
    %159 = vmatpush1.msra.mxu0 0.0
    %160 = vmatprep.subr.mxu0 0.0
    %161 = vmatpush1.msra.mxu0 0.0
    %162 = vmatprep.subr.mxu0 0.0
    %163 = vmatpush1.msra.mxu0 0.0
    %164 = vmatprep.subr.mxu0 0.0
    %165 = vmatpush1.msra.mxu0 0.0
    %166 = vmatprep.subr.mxu0 0.0
    %167 = vmatpush1.msra.mxu0 0.0
    %168 = vmatprep.subr.mxu0 0.0
    %169 = vmatpush1.msra.mxu0 0.0
    %170 = vmatprep.subr.mxu0 0.0
    %171 = vmatpush1.msra.mxu0 0.0
    %172 = vmatprep.subr.mxu0 0.0
    %173 = vmatpush1.msra.mxu0 0.0
    %174 = vmatprep.subr.mxu0 0.0
    %175 = vmatpush1.msra.mxu0 0.0
    %176 = vmatprep.subr.mxu0 0.0
    %177 = vmatpush1.msra.mxu0 0.0
    %178 = vmatprep.subr.mxu0 0.0
    %179 = vmatpush1.msra.mxu0 0.0
    %180 = vmatprep.subr.mxu0 0.0
    %181 = vmatpush1.msra.mxu0 0.0
    %182 = vmatprep.subr.mxu0 0.0
    %183 = vmatpush1.msra.mxu0 0.0
    %184 = vmatprep.subr.mxu0 0.0
    %185 = vmatpush1.msra.mxu0 0.0
    %186 = vmatprep.subr.mxu0 0.0
    %187 = vmatpush1.msra.mxu0 0.0
    %188 = vmatprep.subr.mxu0 0.0
    %189 = vmatpush1.msra.mxu0 0.0
    %190 = vmatprep.subr.mxu0 0.0
    %191 = vmatpush1.msra.mxu0 0.0
    %192 = vmatprep.subr.mxu0 0.0
    %193 = vmatpush1.msra.mxu0 0.0
    %194 = vmatprep.subr.mxu0 0.0
    %195 = vmatpush1.msra.mxu0 0.0
    %196 = vmatprep.mubr.f32.mxu0 0.0
    %197 = vmatmul.mubr.f32.gmra.mrb[0].mxu0 %v124
    %v198 = vpop.f32.mrb[0].mxu0
    %v199 = vadd.f32 0.0, %v198
    %v200 = vpop.f32.mrb[0].mxu0
    %201 = vmatprep.mubr.f32.mxu0 0.0
    %202 = vmatmul.mubr.f32.gmra.mrb[0].mxu0 %v127
    %v203 = vpop.f32.mrb[0].mxu0
    %v204 = vadd.f32 0.0, %v203
    %v205 = vpop.f32.mrb[0].mxu0
    %206 = vmatprep.mubr.f32.mxu0 0.0
    %207 = vmatmul.mubr.f32.gmra.mrb[0].mxu0 %v130
    %v208 = vpop.f32.mrb[0].mxu0
    %v209 = vadd.f32 0.0, %v208
    %v210 = vpop.f32.mrb[0].mxu0
    %211 = vdwg.mxu0
    %212 = vrot.lane.b32.xlu0 %v119, 96
    %v213 = vpop.permute.xlu0 %212
    %214 = vrot.lane.b32.xlu0 %v120, 96
    %v215 = vpop.permute.xlu0 %214
    %216 = vrot.lane.b32.xlu0 %v121, 96
    %v217 = vpop.permute.xlu0 %216
    %v218 = vsel %vm122, %v213, 0
    %v220 = vsel %vm122, %v215, 0
    %v222 = vsel %vm122, %v217, 0
    %224 = vmatprep.subr.mxu0 0.0
    %225 = vmatpush1.msra.mxu0 %v115
    %226 = vmatprep.subr.mxu0 0.0
    %227 = vmatpush1.msra.mxu0 %v116
    %228 = vmatprep.subr.mxu0 0.0
    %229 = vmatpush1.msra.mxu0 %v117
    %230 = vmatprep.subr.mxu0 0.0
    %231 = vmatpush1.msra.mxu0 %v118
    %232 = vmatprep.subr.mxu0 0.0
    %233 = vmatpush1.msra.mxu0 0.0
    %234 = vmatprep.subr.mxu0 0.0
    %235 = vmatpush1.msra.mxu0 0.0
    %236 = vmatprep.subr.mxu0 0.0
    %237 = vmatpush1.msra.mxu0 0.0
    %238 = vmatprep.subr.mxu0 0.0
    %239 = vmatpush1.msra.mxu0 0.0
    %240 = vmatprep.subr.mxu0 0.0
    %241 = vmatpush1.msra.mxu0 0.0
    %242 = vmatprep.subr.mxu0 0.0
    %243 = vmatpush1.msra.mxu0 0.0
    %244 = vmatprep.subr.mxu0 0.0
    %245 = vmatpush1.msra.mxu0 0.0
    %246 = vmatprep.subr.mxu0 0.0
    %247 = vmatpush1.msra.mxu0 0.0
    %248 = vmatprep.subr.mxu0 0.0
    %249 = vmatpush1.msra.mxu0 0.0
    %250 = vmatprep.subr.mxu0 0.0
    %251 = vmatpush1.msra.mxu0 0.0
    %252 = vmatprep.subr.mxu0 0.0
    %253 = vmatpush1.msra.mxu0 0.0
    %254 = vmatprep.subr.mxu0 0.0
    %255 = vmatpush1.msra.mxu0 0.0
    %256 = vmatprep.subr.mxu0 0.0
    %257 = vmatpush1.msra.mxu0 0.0
    %258 = vmatprep.subr.mxu0 0.0
    %259 = vmatpush1.msra.mxu0 0.0
    %260 = vmatprep.subr.mxu0 0.0
    %261 = vmatpush1.msra.mxu0 0.0
    %262 = vmatprep.subr.mxu0 0.0
    %263 = vmatpush1.msra.mxu0 0.0
    %264 = vmatprep.subr.mxu0 0.0
    %265 = vmatpush1.msra.mxu0 0.0
    %266 = vmatprep.subr.mxu0 0.0
    %267 = vmatpush1.msra.mxu0 0.0
    %268 = vmatprep.subr.mxu0 0.0
    %269 = vmatpush1.msra.mxu0 0.0
    %270 = vmatprep.subr.mxu0 0.0
    %271 = vmatpush1.msra.mxu0 0.0
    %272 = vmatprep.subr.mxu0 0.0
    %273 = vmatpush1.msra.mxu0 0.0
    %274 = vmatprep.subr.mxu0 0.0
    %275 = vmatpush1.msra.mxu0 0.0
    %276 = vmatprep.subr.mxu0 0.0
    %277 = vmatpush1.msra.mxu0 0.0
    %278 = vmatprep.subr.mxu0 0.0
    %279 = vmatpush1.msra.mxu0 0.0
    %280 = vmatprep.subr.mxu0 0.0
    %281 = vmatpush1.msra.mxu0 0.0
    %282 = vmatprep.subr.mxu0 0.0
    %283 = vmatpush1.msra.mxu0 0.0
    %284 = vmatprep.subr.mxu0 0.0
    %285 = vmatpush1.msra.mxu0 0.0
    %286 = vmatprep.subr.mxu0 0.0
    %287 = vmatpush1.msra.mxu0 0.0
    %288 = vmatprep.mubr.f32.mxu0 0.0
    %289 = vmatmul.mubr.f32.gmra.mrb[0].mxu0 %v218
    %v290 = vpop.f32.mrb[0].mxu0
    %v291 = vadd.f32 0.0, %v290
    %v292 = vpop.f32.mrb[0].mxu0
    %293 = vmatprep.mubr.f32.mxu0 0.0
    %294 = vmatmul.mubr.f32.gmra.mrb[0].mxu0 %v220
    %v295 = vpop.f32.mrb[0].mxu0
    %v296 = vadd.f32 0.0, %v295
    %v297 = vpop.f32.mrb[0].mxu0
    %298 = vmatprep.mubr.f32.mxu0 0.0
    %299 = vmatmul.mubr.f32.gmra.mrb[0].mxu0 %v222
    %v300 = vpop.f32.mrb[0].mxu0
    %v301 = vadd.f32 0.0, %v300
    %v302 = vpop.f32.mrb[0].mxu0
    %303 = vdwg.mxu0
    %304 = vrot.lane.b32.xlu0 %v119, 64
    %v305 = vpop.permute.xlu0 %304
    %306 = vrot.lane.b32.xlu0 %v120, 64
    %v307 = vpop.permute.xlu0 %306
    %308 = vrot.lane.b32.xlu0 %v121, 64
    %v309 = vpop.permute.xlu0 %308
    %v310 = vsel %vm122, %v305, 0
    %v312 = vsel %vm122, %v307, 0
    %v314 = vsel %vm122, %v309, 0
    %316 = vmatprep.subr.mxu0 0.0
    %317 = vmatpush1.msra.mxu0 %v115
    %318 = vmatprep.subr.mxu0 0.0
    %319 = vmatpush1.msra.mxu0 %v116
    %320 = vmatprep.subr.mxu0 0.0
    %321 = vmatpush1.msra.mxu0 %v117
    %322 = vmatprep.subr.mxu0 0.0
    %323 = vmatpush1.msra.mxu0 %v118
    %324 = vmatprep.subr.mxu0 0.0
    %325 = vmatpush1.msra.mxu0 0.0
    %326 = vmatprep.subr.mxu0 0.0
    %327 = vmatpush1.msra.mxu0 0.0
    %328 = vmatprep.subr.mxu0 0.0
    %329 = vmatpush1.msra.mxu0 0.0
    %330 = vmatprep.subr.mxu0 0.0
    %331 = vmatpush1.msra.mxu0 0.0
    %332 = vmatprep.subr.mxu0 0.0
    %333 = vmatpush1.msra.mxu0 0.0
    %334 = vmatprep.subr.mxu0 0.0
    %335 = vmatpush1.msra.mxu0 0.0
    %336 = vmatprep.subr.mxu0 0.0
    %337 = vmatpush1.msra.mxu0 0.0
    %338 = vmatprep.subr.mxu0 0.0
    %339 = vmatpush1.msra.mxu0 0.0
    %340 = vmatprep.subr.mxu0 0.0
    %341 = vmatpush1.msra.mxu0 0.0
    %342 = vmatprep.subr.mxu0 0.0
    %343 = vmatpush1.msra.mxu0 0.0
    %344 = vmatprep.subr.mxu0 0.0
    %345 = vmatpush1.msra.mxu0 0.0
    %346 = vmatprep.subr.mxu0 0.0
    %347 = vmatpush1.msra.mxu0 0.0
    %348 = vmatprep.subr.mxu0 0.0
    %349 = vmatpush1.msra.mxu0 0.0
    %350 = vmatprep.subr.mxu0 0.0
    %351 = vmatpush1.msra.mxu0 0.0
    %352 = vmatprep.subr.mxu0 0.0
    %353 = vmatpush1.msra.mxu0 0.0
    %354 = vmatprep.subr.mxu0 0.0
    %355 = vmatpush1.msra.mxu0 0.0
    %356 = vmatprep.subr.mxu0 0.0
    %357 = vmatpush1.msra.mxu0 0.0
    %358 = vmatprep.subr.mxu0 0.0
    %359 = vmatpush1.msra.mxu0 0.0
    %360 = vmatprep.subr.mxu0 0.0
    %361 = vmatpush1.msra.mxu0 0.0
    %362 = vmatprep.subr.mxu0 0.0
    %363 = vmatpush1.msra.mxu0 0.0
    %364 = vmatprep.subr.mxu0 0.0
    %365 = vmatpush1.msra.mxu0 0.0
    %366 = vmatprep.subr.mxu0 0.0
    %367 = vmatpush1.msra.mxu0 0.0
    %368 = vmatprep.subr.mxu0 0.0
    %369 = vmatpush1.msra.mxu0 0.0
    %370 = vmatprep.subr.mxu0 0.0
    %371 = vmatpush1.msra.mxu0 0.0
    %372 = vmatprep.subr.mxu0 0.0
    %373 = vmatpush1.msra.mxu0 0.0
    %374 = vmatprep.subr.mxu0 0.0
    %375 = vmatpush1.msra.mxu0 0.0
    %376 = vmatprep.subr.mxu0 0.0
    %377 = vmatpush1.msra.mxu0 0.0
    %378 = vmatprep.subr.mxu0 0.0
    %379 = vmatpush1.msra.mxu0 0.0
    %380 = vmatprep.mubr.f32.mxu0 0.0
    %381 = vmatmul.mubr.f32.gmra.mrb[0].mxu0 %v310
    %v382 = vpop.f32.mrb[0].mxu0
    %v383 = vadd.f32 0.0, %v382
    %v384 = vpop.f32.mrb[0].mxu0
    %385 = vmatprep.mubr.f32.mxu0 0.0
    %386 = vmatmul.mubr.f32.gmra.mrb[0].mxu0 %v312
    %v387 = vpop.f32.mrb[0].mxu0
    %v388 = vadd.f32 0.0, %v387
    %v389 = vpop.f32.mrb[0].mxu0
    %390 = vmatprep.mubr.f32.mxu0 0.0
    %391 = vmatmul.mubr.f32.gmra.mrb[0].mxu0 %v314
    %v392 = vpop.f32.mrb[0].mxu0
    %v393 = vadd.f32 0.0, %v392
    %v394 = vpop.f32.mrb[0].mxu0
    %395 = vdwg.mxu0
    %v396 = vmul.f32 %v199, %v199
    %v397 = vmul.f32 %v204, %v204
    %v398 = vmul.f32 %v209, %v209
    %v399 = vmul.f32 %v291, %v291
    %v400 = vmul.f32 %v296, %v296
    %v401 = vmul.f32 %v301, %v301
    %v402 = vadd.f32 %v396, %v399
    %v403 = vadd.f32 %v397, %v400
    %v404 = vadd.f32 %v398, %v401
    %v405 = vmul.f32 %v383, %v383
    %v406 = vmul.f32 %v388, %v388
    %v407 = vmul.f32 %v393, %v393
    %v408 = vadd.f32 %v402, %v405
    %v409 = vadd.f32 %v403, %v406
    %v410 = vadd.f32 %v404, %v407
    %v411 = vrsqrt.pop %v408
    %v412 = vmul.f32 %v408, %v411
    %vm413 = vcmp.eq.f32.partialorder %v408, inf
    %v414 = vsel %vm413, %v408, %v412
    %vm415 = vcmp.eq.f32.partialorder %v408, 0.0
    %v416 = vand.u32 %v408, 2147483648
    %v417 = vsel %vm415, %v416, %v414
    %v418 = vrsqrt.pop %v409
    %v419 = vmul.f32 %v409, %v418
    %vm420 = vcmp.eq.f32.partialorder %v409, inf
    %v421 = vsel %vm420, %v409, %v419
    %vm422 = vcmp.eq.f32.partialorder %v409, 0.0
    %v423 = vand.u32 %v409, 2147483648
    %v424 = vsel %vm422, %v423, %v421
    %v425 = vrsqrt.pop %v410
    %v426 = vmul.f32 %v410, %v425
    %vm427 = vcmp.eq.f32.partialorder %v410, inf
    %v428 = vsel %vm427, %v410, %v426
    %vm429 = vcmp.eq.f32.partialorder %v410, 0.0
    %v430 = vand.u32 %v410, 2147483648
    %v431 = vsel %vm429, %v430, %v428
    %v432 = vld [vmem:[#allocation2] sm:$0xff]
    %v433 = vld [vmem:[#allocation2 + $0x8] sm:$0xff]
    %v434 = vld [vmem:[#allocation2 + $0x10] sm:$0xff]
    %v435 = vld [vmem:[#allocation8] sm:$0xff]
    %v436 = vld [vmem:[#allocation8 + $0x8] sm:$0xff]
    %v437 = vld [vmem:[#allocation8 + $0x10] sm:$0xff]
    %v438 = vld [vmem:[#allocation8 + $0x18] sm:$0xff]
    %v439 = vld [vmem:[#allocation10] sm:$0xff]
    %v440 = vld [vmem:[#allocation10 + $0x8] sm:$0xff]
    %v441 = vld [vmem:[#allocation10 + $0x10] sm:$0xff]
    %v442 = vld [vmem:[#allocation10 + $0x18] sm:$0xff]
    %v444 = vsel %vm122, %v417, 0
    %v447 = vsel %vm122, %v424, 0
    %v450 = vsel %vm122, %v431, 0
    %452 = vmatprep.subr.mxu0 0.0
    %453 = vmatpush1.msra.mxu0 %v439
    %454 = vmatprep.subr.mxu0 0.0
    %455 = vmatpush1.msra.mxu0 %v440
    %456 = vmatprep.subr.mxu0 0.0
    %457 = vmatpush1.msra.mxu0 %v441
    %458 = vmatprep.subr.mxu0 0.0
    %459 = vmatpush1.msra.mxu0 %v442
    %460 = vmatprep.subr.mxu0 0.0
    %461 = vmatpush1.msra.mxu0 0.0
    %462 = vmatprep.subr.mxu0 0.0
    %463 = vmatpush1.msra.mxu0 0.0
    %464 = vmatprep.subr.mxu0 0.0
    %465 = vmatpush1.msra.mxu0 0.0
    %466 = vmatprep.subr.mxu0 0.0
    %467 = vmatpush1.msra.mxu0 0.0
    %468 = vmatprep.subr.mxu0 0.0
    %469 = vmatpush1.msra.mxu0 0.0
    %470 = vmatprep.subr.mxu0 0.0
    %471 = vmatpush1.msra.mxu0 0.0
    %472 = vmatprep.subr.mxu0 0.0
    %473 = vmatpush1.msra.mxu0 0.0
    %474 = vmatprep.subr.mxu0 0.0
    %475 = vmatpush1.msra.mxu0 0.0
    %476 = vmatprep.subr.mxu0 0.0
    %477 = vmatpush1.msra.mxu0 0.0
    %478 = vmatprep.subr.mxu0 0.0
    %479 = vmatpush1.msra.mxu0 0.0
    %480 = vmatprep.subr.mxu0 0.0
    %481 = vmatpush1.msra.mxu0 0.0
    %482 = vmatprep.subr.mxu0 0.0
    %483 = vmatpush1.msra.mxu0 0.0
    %484 = vmatprep.subr.mxu0 0.0
    %485 = vmatpush1.msra.mxu0 0.0
    %486 = vmatprep.subr.mxu0 0.0
    %487 = vmatpush1.msra.mxu0 0.0
    %488 = vmatprep.subr.mxu0 0.0
    %489 = vmatpush1.msra.mxu0 0.0
    %490 = vmatprep.subr.mxu0 0.0
    %491 = vmatpush1.msra.mxu0 0.0
    %492 = vmatprep.subr.mxu0 0.0
    %493 = vmatpush1.msra.mxu0 0.0
    %494 = vmatprep.subr.mxu0 0.0
    %495 = vmatpush1.msra.mxu0 0.0
    %496 = vmatprep.subr.mxu0 0.0
    %497 = vmatpush1.msra.mxu0 0.0
    %498 = vmatprep.subr.mxu0 0.0
    %499 = vmatpush1.msra.mxu0 0.0
    %500 = vmatprep.subr.mxu0 0.0
    %501 = vmatpush1.msra.mxu0 0.0
    %502 = vmatprep.subr.mxu0 0.0
    %503 = vmatpush1.msra.mxu0 0.0
    %504 = vmatprep.subr.mxu0 0.0
    %505 = vmatpush1.msra.mxu0 0.0
    %506 = vmatprep.subr.mxu0 0.0
    %507 = vmatpush1.msra.mxu0 0.0
    %508 = vmatprep.subr.mxu0 0.0
    %509 = vmatpush1.msra.mxu0 0.0
    %510 = vmatprep.subr.mxu0 0.0
    %511 = vmatpush1.msra.mxu0 0.0
    %512 = vmatprep.subr.mxu0 0.0
    %513 = vmatpush1.msra.mxu0 0.0
    %514 = vmatprep.subr.mxu0 0.0
    %515 = vmatpush1.msra.mxu0 0.0
    %516 = vmatprep.mubr.f32.mxu0 0.0
    %517 = vmatmul.mubr.f32.gmra.mrb[0].mxu0 %v444
    %v518 = vpop.f32.mrb[0].mxu0
    %v519 = vadd.f32 0.0, %v518
    %v520 = vpop.f32.mrb[0].mxu0
    %521 = vmatprep.mubr.f32.mxu0 0.0
    %522 = vmatmul.mubr.f32.gmra.mrb[0].mxu0 %v447
    %v523 = vpop.f32.mrb[0].mxu0
    %v524 = vadd.f32 0.0, %v523
    %v525 = vpop.f32.mrb[0].mxu0
    %526 = vmatprep.mubr.f32.mxu0 0.0
    %527 = vmatmul.mubr.f32.gmra.mrb[0].mxu0 %v450
    %v528 = vpop.f32.mrb[0].mxu0
    %v529 = vadd.f32 0.0, %v528
    %v530 = vpop.f32.mrb[0].mxu0
    %531 = vdwg.mxu0
    %v533 = vsel %vm122, %v432, 0
    %v536 = vsel %vm122, %v433, 0
    %v539 = vsel %vm122, %v434, 0
    %541 = vmatprep.subr.mxu0 0.0
    %542 = vmatpush1.msra.mxu0 %v435
    %543 = vmatprep.subr.mxu0 0.0
    %544 = vmatpush1.msra.mxu0 %v436
    %545 = vmatprep.subr.mxu0 0.0
    %546 = vmatpush1.msra.mxu0 %v437
    %547 = vmatprep.subr.mxu0 0.0
    %548 = vmatpush1.msra.mxu0 %v438
    %549 = vmatprep.subr.mxu0 0.0
    %550 = vmatpush1.msra.mxu0 0.0
    %551 = vmatprep.subr.mxu0 0.0
    %552 = vmatpush1.msra.mxu0 0.0
    %553 = vmatprep.subr.mxu0 0.0
    %554 = vmatpush1.msra.mxu0 0.0
    %555 = vmatprep.subr.mxu0 0.0
    %556 = vmatpush1.msra.mxu0 0.0
    %557 = vmatprep.subr.mxu0 0.0
    %558 = vmatpush1.msra.mxu0 0.0
    %559 = vmatprep.subr.mxu0 0.0
    %560 = vmatpush1.msra.mxu0 0.0
    %561 = vmatprep.subr.mxu0 0.0
    %562 = vmatpush1.msra.mxu0 0.0
    %563 = vmatprep.subr.mxu0 0.0
    %564 = vmatpush1.msra.mxu0 0.0
    %565 = vmatprep.subr.mxu0 0.0
    %566 = vmatpush1.msra.mxu0 0.0
    %567 = vmatprep.subr.mxu0 0.0
    %568 = vmatpush1.msra.mxu0 0.0
    %569 = vmatprep.subr.mxu0 0.0
    %570 = vmatpush1.msra.mxu0 0.0
    %571 = vmatprep.subr.mxu0 0.0
    %572 = vmatpush1.msra.mxu0 0.0
    %573 = vmatprep.subr.mxu0 0.0
    %574 = vmatpush1.msra.mxu0 0.0
    %575 = vmatprep.subr.mxu0 0.0
    %576 = vmatpush1.msra.mxu0 0.0
    %577 = vmatprep.subr.mxu0 0.0
    %578 = vmatpush1.msra.mxu0 0.0
    %579 = vmatprep.subr.mxu0 0.0
    %580 = vmatpush1.msra.mxu0 0.0
    %581 = vmatprep.subr.mxu0 0.0
    %582 = vmatpush1.msra.mxu0 0.0
    %583 = vmatprep.subr.mxu0 0.0
    %584 = vmatpush1.msra.mxu0 0.0
    %585 = vmatprep.subr.mxu0 0.0
    %586 = vmatpush1.msra.mxu0 0.0
    %587 = vmatprep.subr.mxu0 0.0
    %588 = vmatpush1.msra.mxu0 0.0
    %589 = vmatprep.subr.mxu0 0.0
    %590 = vmatpush1.msra.mxu0 0.0
    %591 = vmatprep.subr.mxu0 0.0
    %592 = vmatpush1.msra.mxu0 0.0
    %593 = vmatprep.subr.mxu0 0.0
    %594 = vmatpush1.msra.mxu0 0.0
    %595 = vmatprep.subr.mxu0 0.0
    %596 = vmatpush1.msra.mxu0 0.0
    %597 = vmatprep.subr.mxu0 0.0
    %598 = vmatpush1.msra.mxu0 0.0
    %599 = vmatprep.subr.mxu0 0.0
    %600 = vmatpush1.msra.mxu0 0.0
    %601 = vmatprep.subr.mxu0 0.0
    %602 = vmatpush1.msra.mxu0 0.0
    %603 = vmatprep.subr.mxu0 0.0
    %604 = vmatpush1.msra.mxu0 0.0
    %605 = vmatprep.mubr.f32.mxu0 0.0
    %606 = vmatmul.mubr.f32.gmra.mrb[0].mxu0 %v533
    %v607 = vpop.f32.mrb[0].mxu0
    %v608 = vadd.f32 %v519, %v607
    %v609 = vpop.f32.mrb[0].mxu0
    %610 = vmatprep.mubr.f32.mxu0 0.0
    %611 = vmatmul.mubr.f32.gmra.mrb[0].mxu0 %v536
    %v612 = vpop.f32.mrb[0].mxu0
    %v613 = vadd.f32 %v524, %v612
    %v614 = vpop.f32.mrb[0].mxu0
    %615 = vmatprep.mubr.f32.mxu0 0.0
    %616 = vmatmul.mubr.f32.gmra.mrb[0].mxu0 %v539
    %v617 = vpop.f32.mrb[0].mxu0
    %v618 = vadd.f32 %v529, %v617
    %v619 = vpop.f32.mrb[0].mxu0
    %620 = vdwg.mxu0
    %v621 = vld [vmem:[%s5] sm:$0x1]
    %v623 = vlaneseq
    %v624 = vshrl.u32 %v623, 7
    %v625 = vsub.s32 0, %v624
    %v626 = vrot.slane %v621, %v625
    %v628 = vadd.f32 %v608, %v626
    %v629 = vadd.f32 %v613, %v626
    %v630 = vadd.f32 %v618, %v626
    %v631 = vxor.u32 %v628, 2147483648
    %v632 = vxor.u32 %v629, 2147483648
    %v633 = vxor.u32 %v630, 2147483648
    %v634 = vmul.f32 %v631, 1.442695
    %v635 = vpow.pop %v634
    %v636 = vmul.f32 %v632, 1.442695
    %v637 = vpow.pop %v636
    %v638 = vmul.f32 %v633, 1.442695
    %v639 = vpow.pop %v638
    %v640 = vadd.f32 %v635, 1.0
    %v641 = vadd.f32 %v637, 1.0
    %v642 = vadd.f32 %v639, 1.0
    %v643 = vrcp.pop %v640
    %v644 = vmul.f32 1.0, %v643
    %v645 = vrcp.pop %v641
    %v646 = vmul.f32 1.0, %v645
    %v647 = vrcp.pop %v642
    %v648 = vmul.f32 1.0, %v647
    %v649 = vmul.f32 %v628, %v644
    %v650 = vmul.f32 %v629, %v646
    %v651 = vmul.f32 %v630, %v648
    %v652 = vld [vmem:[#allocation11] sm:$0xff]
    %v653 = vld [vmem:[#allocation11 + $0x8] sm:$0xff]
    %v654 = vld [vmem:[#allocation11 + $0x10] sm:$0xff]
    %v655 = vld [vmem:[#allocation11 + $0x18] sm:$0xff]
    %v656 = vld [vmem:[#allocation11 + $0x20] sm:$0xff]
    %v657 = vld [vmem:[#allocation11 + $0x28] sm:$0xff]
    %v658 = vld [vmem:[#allocation11 + $0x30] sm:$0xff]
    %v659 = vld [vmem:[#allocation11 + $0x38] sm:$0xff]
    %v660 = vld [vmem:[%s7] sm:$0x1]
    %v662 = vlaneseq
    %v663 = vshrl.u32 %v662, 7
    %v664 = vsub.s32 0, %v663
    %v665 = vrot.slane %v660, %v664
    %vm667 = vcmask 523264
    %v669 = vsel %vm667, %v649, 0
    %v672 = vsel %vm667, %v650, 0
    %v675 = vsel %vm667, %v651, 0
    %677 = vmatprep.subr.mxu0 0.0
    %678 = vmatpush1.msra.mxu0 %v652
    %679 = vmatprep.subr.mxu0 0.0
    %680 = vmatpush1.msra.mxu0 %v653
    %681 = vmatprep.subr.mxu0 0.0
    %682 = vmatpush1.msra.mxu0 %v654
    %683 = vmatprep.subr.mxu0 0.0
    %684 = vmatpush1.msra.mxu0 %v655
    %685 = vmatprep.subr.mxu0 0.0
    %686 = vmatpush1.msra.mxu0 %v656
    %687 = vmatprep.subr.mxu0 0.0
    %688 = vmatpush1.msra.mxu0 %v657
    %689 = vmatprep.subr.mxu0 0.0
    %690 = vmatpush1.msra.mxu0 %v658
    %691 = vmatprep.subr.mxu0 0.0
    %692 = vmatpush1.msra.mxu0 %v659
    %693 = vmatprep.subr.mxu0 0.0
    %694 = vmatpush1.msra.mxu0 0.0
    %695 = vmatprep.subr.mxu0 0.0
    %696 = vmatpush1.msra.mxu0 0.0
    %697 = vmatprep.subr.mxu0 0.0
    %698 = vmatpush1.msra.mxu0 0.0
    %699 = vmatprep.subr.mxu0 0.0
    %700 = vmatpush1.msra.mxu0 0.0
    %701 = vmatprep.subr.mxu0 0.0
    %702 = vmatpush1.msra.mxu0 0.0
    %703 = vmatprep.subr.mxu0 0.0
    %704 = vmatpush1.msra.mxu0 0.0
    %705 = vmatprep.subr.mxu0 0.0
    %706 = vmatpush1.msra.mxu0 0.0
    %707 = vmatprep.subr.mxu0 0.0
    %708 = vmatpush1.msra.mxu0 0.0
    %709 = vmatprep.subr.mxu0 0.0
    %710 = vmatpush1.msra.mxu0 0.0
    %711 = vmatprep.subr.mxu0 0.0
    %712 = vmatpush1.msra.mxu0 0.0
    %713 = vmatprep.subr.mxu0 0.0
    %714 = vmatpush1.msra.mxu0 0.0
    %715 = vmatprep.subr.mxu0 0.0
    %716 = vmatpush1.msra.mxu0 0.0
    %717 = vmatprep.subr.mxu0 0.0
    %718 = vmatpush1.msra.mxu0 0.0
    %719 = vmatprep.subr.mxu0 0.0
    %720 = vmatpush1.msra.mxu0 0.0
    %721 = vmatprep.subr.mxu0 0.0
    %722 = vmatpush1.msra.mxu0 0.0
    %723 = vmatprep.subr.mxu0 0.0
    %724 = vmatpush1.msra.mxu0 0.0
    %725 = vmatprep.subr.mxu0 0.0
    %726 = vmatpush1.msra.mxu0 0.0
    %727 = vmatprep.subr.mxu0 0.0
    %728 = vmatpush1.msra.mxu0 0.0
    %729 = vmatprep.subr.mxu0 0.0
    %730 = vmatpush1.msra.mxu0 0.0
    %731 = vmatprep.subr.mxu0 0.0
    %732 = vmatpush1.msra.mxu0 0.0
    %733 = vmatprep.subr.mxu0 0.0
    %734 = vmatpush1.msra.mxu0 0.0
    %735 = vmatprep.subr.mxu0 0.0
    %736 = vmatpush1.msra.mxu0 0.0
    %737 = vmatprep.subr.mxu0 0.0
    %738 = vmatpush1.msra.mxu0 0.0
    %739 = vmatprep.subr.mxu0 0.0
    %740 = vmatpush1.msra.mxu0 0.0
    %741 = vmatprep.mubr.f32.mxu0 0.0
    %742 = vmatmul.mubr.f32.gmra.mrb[0].mxu0 %v669
    %v743 = vpop.f32.mrb[0].mxu0
    %v744 = vadd.f32 %v665, %v743
    %v745 = vpop.f32.mrb[0].mxu0
    %746 = vmatprep.mubr.f32.mxu0 0.0
    %747 = vmatmul.mubr.f32.gmra.mrb[0].mxu0 %v672
    %v748 = vpop.f32.mrb[0].mxu0
    %v749 = vadd.f32 %v665, %v748
    %v750 = vpop.f32.mrb[0].mxu0
    %751 = vmatprep.mubr.f32.mxu0 0.0
    %752 = vmatmul.mubr.f32.gmra.mrb[0].mxu0 %v675
    %v753 = vpop.f32.mrb[0].mxu0
    %v754 = vadd.f32 %v665, %v753
    %v755 = vpop.f32.mrb[0].mxu0
    %756 = vdwg.mxu0
    %757 = vst.msk [vmem:[#allocation13] sm:$0xff] %vm122, %v744
    %758 = vst.msk [vmem:[#allocation13 + $0x8] sm:$0xff] %vm122, %v749
    %759 = vst.msk [vmem:[#allocation13 + $0x10] sm:$0xff] %vm122, %v754
    %v760 = vmul.f32 %v744, %v199
    %v761 = vmul.f32 %v749, %v204
    %v762 = vmul.f32 %v754, %v209
    %v763 = vmul.f32 %v744, %v291
    %v764 = vmul.f32 %v749, %v296
    %v765 = vmul.f32 %v754, %v301
    %v766 = vmul.f32 %v744, %v383
    %v767 = vmul.f32 %v749, %v388
    %v768 = vmul.f32 %v754, %v393
    %772 = vrot.lane.b32.xlu0 %v760, 96
    %v773 = vpop.permute.xlu0 %772
    %774 = vrot.lane.b32.xlu0 %v761, 96
    %v775 = vpop.permute.xlu0 %774
    %776 = vrot.lane.b32.xlu0 %v762, 96
    %v777 = vpop.permute.xlu0 %776
    %784 = vrot.lane.b32.xlu0 %v766, 32
    %v785 = vpop.permute.xlu0 %784
    %786 = vrot.lane.b32.xlu0 %v767, 32
    %v787 = vpop.permute.xlu0 %786
    %788 = vrot.lane.b32.xlu0 %v768, 32
    %v789 = vpop.permute.xlu0 %788
    %v793 = vsel %vm122, %v773, %v763
    %v794 = vsel %vm122, %v775, %v764
    %v795 = vsel %vm122, %v777, %v765
    %v796 = vsel %vm667, %v793, %v785
    %v797 = vsel %vm667, %v794, %v787
    %v798 = vsel %vm667, %v795, %v789
    %vm799 = vcmask 785408
    %800 = vst.msk [vmem:[#allocation14] sm:$0xff] %vm799, %v796
    %801 = vst.msk [vmem:[#allocation14 + $0x8] sm:$0xff] %vm799, %v797
    %802 = vst.msk [vmem:[#allocation14 + $0x10] sm:$0xff] %vm799, %v798
    // Predicated region
    $region58: #{tpu_custom_call.1} parent=1 // pred_check
      _
    $region59: #{tpu_custom_call.1} parent=1 // pred_check_branch
      %804 = sbr.rel (0) target = $region61
    $region60: #{tpu_custom_call.1} parent=1 // pred_region
      %s806 = ssub.s32 384, 384
      %807 = vsyncadd [#allocation4], %s806
      %s808 = sshll.u32 [#allocation13], 4
      %s809 = int_to_ptr.vmem [resolvable:$true] %s808
      %814 = dma.vmem_to_hbm [thread:$0]  %s809, 384, %s8, [#allocation4], 128, 128, 8
    $region61: #{tpu_custom_call.1} parent=1 // pred_fallthru
      _
    // Predicated region
    $region62: #{tpu_custom_call.1} parent=1 // pred_check
      _
    $region63: #{tpu_custom_call.1} parent=1 // pred_check_branch
      %816 = sbr.rel (0) target = $region65
    $region64: #{tpu_custom_call.1} parent=1 // pred_region
      %s818 = ssub.s32 384, 384
      %819 = vsyncadd [#allocation15], %s818
      %s820 = sshll.u32 [#allocation14], 4
      %s821 = int_to_ptr.vmem [resolvable:$true] %s820
      %826 = dma.vmem_to_hbm [thread:$0]  %s821, 384, %s9, [#allocation15], 128, 128, 8
    $region65: #{tpu_custom_call.1} parent=1 // pred_fallthru
      _
    // Predicated region
    $region66: #{tpu_custom_call.1} parent=1 // pred_check
      _
    $region67: #{tpu_custom_call.1} parent=1 // pred_check_branch
      %828 = sbr.rel (0) target = $region69
    $region68: #{tpu_custom_call.1} parent=1 // pred_region
      %829 = dma.done [#allocation4], 384
    $region69: #{tpu_custom_call.1} parent=1 // pred_fallthru
      _
    // Predicated region
    $region70: #{tpu_custom_call.1} parent=1 // pred_check
      _
    $region71: #{tpu_custom_call.1} parent=1 // pred_check_branch
      %831 = sbr.rel (0) target = $region73
    $region72: #{tpu_custom_call.1} parent=1 // pred_region
      %832 = dma.done [#allocation15], 384
    $region73: #{tpu_custom_call.1} parent=1 // pred_fallthru
      _
    %833 = vsyncpa [#allocation3], 1
    %834 = vsyncpa [#allocation6], 1
    %835 = vsyncpa [#allocation9], 1
    %836 = vsyncpa [#allocation12], 1
    %837 = vsyncpa [#allocation4], 1
    %838 = vsyncpa [#allocation15], 1

</llo_original>
